<compile_context>
chip_gen: v6e
topology: v6e:2x2x1
jax: 0.10.0
libtpu: 0.0.40
codegen_flags: <defaults>
</compile_context>

<pallas_src>
import functools

import jax
import jax.numpy as jnp
import numpy as np
from jax.experimental import pallas as pl
from jax.experimental.pallas import tpu as pltpu

KERNEL_SIZES = (3, 4, 5)
LANE = 128


def _round_up(x, m):
    return (x + m - 1) // m * m


def _cnn_kernel(x_ref, wf_ref, bconv_ref, pmask_ref, wfc_ref, fcb_ref,
                out_ref, *, tb, wp):
    """One batch tile of `tb` sentences.

    x_ref     : (tb*wp, kmax*E)  im2col patches (compute dtype)
    wf_ref    : (kmax*E, F3P)    fused conv weight, zero-padded cols >= f3
    bconv_ref : (1, F3P)         conv bias (0 in padded columns)
    pmask_ref : (wp, F3P)        additive pool mask (0 valid / -inf invalid)
    wfc_ref   : (F3P, F3P)       fc weight; class columns live at [f3, f3+C)
    fcb_ref   : (1, F3P)         fc bias at class columns, -inf elsewhere
    out_ref   : (tb, F3P)        cols [0, f3): feats, [f3, f3+C): softmax probs
    """
    f3p = wf_ref.shape[1]

    # Fused convolution for all kernel sizes: ONE deep MXU matmul (K = kmax*E).
    acc = jnp.dot(x_ref[...], wf_ref[...],
                  preferred_element_type=jnp.float32)          # (tb*wp, F3P)

    # Vectorized masked max-pool over window positions.  `wp` is a multiple of
    # 8, so the reshape is layout-preserving; the additive -inf mask kills all
    # window positions that would read padding / out-of-range tokens.
    pooled = jnp.max(acc.reshape(tb, wp, f3p) + pmask_ref[...], axis=1)

    # Conv bias + ReLU AFTER the pool (exact: per-filter bias, monotone ReLU).
    feats = jnp.maximum(pooled + bconv_ref[...], 0.0)          # (tb, F3P)

    # Linear + softmax, lane-padded: the real class logits land in the spare
    # columns [f3, f3+C); every other column is forced to -inf by fcb_ref so
    # the row-wise max / sum only see the real classes.
    logits = jnp.dot(feats, wfc_ref[...],
                     preferred_element_type=jnp.float32) + fcb_ref[...]
    ex = jnp.exp(logits - jnp.max(logits, axis=-1, keepdims=True))
    probs = ex * pl.reciprocal(jnp.sum(ex, axis=-1, keepdims=True),
                               approx=True)                    # (tb, F3P)

    # Single lane-dense store: feats occupy cols [0, f3) (zero elsewhere),
    # probs occupy cols [f3, f3+C) (zero elsewhere).
    out_ref[...] = feats + probs


def cnn_forward(token_ids, emb_table, conv_ws, conv_bs, wfc, bfc, *,
                tb_max=256, compute_dtype=jnp.bfloat16, vmem_limit_bytes=None):
    """Pallas forward.

    conv_ws[g] : [k_g, E, F]  (= torch conv1d.weight.view(F, k, E).permute(1, 2, 0))
    conv_bs[g] : [F]
    wfc        : [F * nK, C]  (= torch fc.weight.T, torch feature order)
    bfc        : [C]
    Returns (softmax probs [B, C], extracted features [B, F*nK] in torch's
    cat(dim=2).view(B, -1) layout), like the PyTorch module.
    """
    B, L = token_ids.shape
    V, E = emb_table.shape
    F = conv_ws[0].shape[2]
    nK = len(KERNEL_SIZES)
    kmax = max(KERNEL_SIZES)
    ncls = wfc.shape[1]
    f3 = F * nK
    f3p = _round_up(max(f3 + ncls, LANE), LANE)
    assert L >= kmax

    pmax = L - min(KERNEL_SIZES) + 1            # largest window count
    wp = _round_up(pmax, 8)                     # window rows per sentence
    tb = min(_round_up(tb_max, 8), _round_up(B, 8))   # sentences per grid step
    b_pad = _round_up(B, tb)

    # ---- im2col gather straight from the embedding table (one pass) -------
    # token ids are padded (batch + sequence) with a dedicated pad id whose
    # embedding row is zero; invalid windows only ever feed pool positions the
    # mask kills, so padding is never observable in the output.
    # TODO(synk): the nn.Embedding row gather stays in the wrapper (a
    # data-dependent row gather has no clean portable Mosaic lowering); it
    # produces the im2col slab directly, with no extra x materialization.
    pad_id = V
    ids = jnp.pad(token_ids.astype(jnp.int32),
                  ((0, b_pad - B), (0, wp + kmax - 1 - L)),
                  constant_values=pad_id)                     # (b_pad, wp+kmax-1)
    win = jnp.arange(wp)[:, None] + jnp.arange(kmax)[None, :]  # (wp, kmax)
    win_tok = ids[:, win]                                      # (b_pad, wp, kmax)
    emb_ext = jnp.concatenate(
        [emb_table, jnp.zeros((1, E), emb_table.dtype)], axis=0
    ).astype(compute_dtype)
    x2d = jnp.take(emb_ext, win_tok, axis=0).reshape(b_pad * wp, kmax * E)

    # ---- fused conv weight / bias, filter-major ksize-minor columns --------
    wf4 = jnp.zeros((kmax, E, F, nK), jnp.float32)
    for g, (k, w) in enumerate(zip(KERNEL_SIZES, conv_ws)):
        wf4 = wf4.at[:k, :, :, g].set(w.astype(jnp.float32))
    wf = jnp.pad(wf4.reshape(kmax, E, f3), ((0, 0), (0, 0), (0, f3p - f3)))
    wf = wf.reshape(kmax * E, f3p).astype(compute_dtype)

    bconv = jnp.stack([b.astype(jnp.float32) for b in conv_bs], axis=1)
    bconv = jnp.pad(bconv.reshape(1, f3), ((0, 0), (0, f3p - f3)))

    # ---- fc weight/bias padded so class logits land in spare lane columns --
    wfc_pad = jnp.zeros((f3p, f3p), jnp.float32)
    wfc_pad = wfc_pad.at[:f3, f3:f3 + ncls].set(wfc.astype(jnp.float32))
    fcb = jnp.full((1, f3p), -jnp.inf, jnp.float32)
    fcb = fcb.at[0, f3:f3 + ncls].set(bfc.astype(jnp.float32))

    # ---- grid-invariant additive pool mask (built once on the host) --------
    pmax_col = np.full((f3p,), wp, np.int64)     # padded cols: "valid" (acc==0)
    for g, k in enumerate(KERNEL_SIZES):
        pmax_col[np.arange(F) * nK + g] = L - k + 1
    pool_mask = jnp.asarray(
        np.where(np.arange(wp)[:, None] < pmax_col[None, :], 0.0, -np.inf),
        jnp.float32)

    kernel = functools.partial(_cnn_kernel, tb=tb, wp=wp)
    out = pl.pallas_call(
        kernel,
        grid=(b_pad // tb,),
        in_specs=[
            pl.BlockSpec((tb * wp, kmax * E), lambda b: (b, 0)),   # patches
            pl.BlockSpec((kmax * E, f3p), lambda b: (0, 0)),       # conv weight
            pl.BlockSpec((1, f3p), lambda b: (0, 0)),              # conv bias
            pl.BlockSpec((wp, f3p), lambda b: (0, 0)),             # pool mask
            pl.BlockSpec((f3p, f3p), lambda b: (0, 0)),            # fc weight
            pl.BlockSpec((1, f3p), lambda b: (0, 0)),              # fc bias/mask
        ],
        out_specs=pl.BlockSpec((tb, f3p), lambda b: (b, 0)),
        out_shape=jax.ShapeDtypeStruct((b_pad, f3p), jnp.float32),
        compiler_params=pltpu.CompilerParams(
            dimension_semantics=("parallel",),
            vmem_limit_bytes=vmem_limit_bytes),
    )(x2d, wf, bconv, pool_mask, wfc_pad, fcb)

    feats = out[:B, :f3]                 # already filter-major / ksize-minor
    probs = out[:B, f3:f3 + ncls]
    return probs, feats


def reference(token_ids, emb_table, conv_ws, conv_bs, wfc, bfc):
    """Pure-JAX reference mirroring the PyTorch forward."""
    x = emb_table[token_ids]                      # (B, L, E)
    B, L, _ = x.shape
    pooled = []
    for k, W, b in zip(KERNEL_SIZES, conv_ws, conv_bs):
        P = L - k + 1
        acc = sum(jnp.einsum('ble,ef->blf', x[:, j:j + P, :], W[j])
                  for j in range(k))
        acc = jnp.maximum(acc + b[None, None, :], 0.0)
        pooled.append(jnp.max(acc, axis=1))       # (B, F)
    feats = jnp.stack(pooled, axis=2).reshape(B, -1)   # filter-major, k-minor
    logits = feats @ wfc + bfc
    return jax.nn.softmax(logits, axis=1), feats


if __name__ == "__main__":
    # Small shapes consistent with the module: sentence_len=16, embedding=32,
    # num_filters=16, vocab=50, batch=10 (exercises batch-tile padding),
    # kernel_sizes=[3,4,5], 2 output classes.
    B, L, E, F, V = 10, 16, 32, 16, 50
    key = jax.random.PRNGKey(0)
    ks = jax.random.split(key, 10)

    token_ids = jax.random.randint(ks[0], (B, L), 0, V, dtype=jnp.int32)
    emb_table = jax.random.normal(ks[1], (V, E), jnp.float32)
    conv_ws = [0.1 * jax.random.normal(ks[2 + i], (k, E, F), jnp.float32)
               for i, k in enumerate(KERNEL_SIZES)]
    conv_bs = [0.1 * jax.random.normal(ks[5 + i], (F,), jnp.float32)
               for i in range(len(KERNEL_SIZES))]
    wfc = 0.1 * jax.random.normal(ks[8], (F * len(KERNEL_SIZES), 2), jnp.float32)
    bfc = 0.1 * jax.random.normal(ks[9], (2,), jnp.float32)

    probs, feats = cnn_forward(token_ids, emb_table, conv_ws, conv_bs, wfc, bfc)
    probs, feats = jax.block_until_ready((probs, feats))

    ref_probs, ref_feats = reference(token_ids, emb_table, conv_ws, conv_bs,
                                     wfc, bfc)
    # bf16 MXU inputs (default compute_dtype) -> loosened tolerances.
    np.testing.assert_allclose(np.asarray(feats), np.asarray(ref_feats),
                               rtol=3e-2, atol=3e-2)
    np.testing.assert_allclose(np.asarray(probs), np.asarray(ref_probs),
                               rtol=2e-2, atol=2e-2)
    print("KERNEL_OK")
</pallas_src>

<mosaic_0001>
module attributes {stable_mosaic.version = 11 : i64} {
  func.func @_cnn_kernel(%arg0: i32, %arg1: memref<256x160xbf16, #tpu.memory_space<vmem>>, %arg2: memref<160x128xbf16, #tpu.memory_space<vmem>>, %arg3: memref<1x128xf32, #tpu.memory_space<vmem>>, %arg4: memref<16x128xf32, #tpu.memory_space<vmem>>, %arg5: memref<128x128xf32, #tpu.memory_space<vmem>>, %arg6: memref<1x128xf32, #tpu.memory_space<vmem>>, %arg7: memref<16x128xf32, #tpu.memory_space<vmem>>) attributes {dimension_semantics = [#tpu.dimension_semantics<parallel>], iteration_bounds = array<i64: 1>, scalar_prefetch = 0 : i64, scratch_operands = 0 : i64, tpu.core_type = #tpu.core_type<tc>, window_params = [{transform_indices = @transform_0, window_bounds = array<i64: 256, 160>}, {pipeline_mode = #tpu.pipeline_mode<synchronous>, transform_indices = @transform_1, window_bounds = array<i64: 160, 128>}, {pipeline_mode = #tpu.pipeline_mode<synchronous>, transform_indices = @transform_2, window_bounds = array<i64: 1, 128>}, {pipeline_mode = #tpu.pipeline_mode<synchronous>, transform_indices = @transform_3, window_bounds = array<i64: 16, 128>}, {pipeline_mode = #tpu.pipeline_mode<synchronous>, transform_indices = @transform_4, window_bounds = array<i64: 128, 128>}, {pipeline_mode = #tpu.pipeline_mode<synchronous>, transform_indices = @transform_5, window_bounds = array<i64: 1, 128>}, {transform_indices = @transform_6, window_bounds = array<i64: 16, 128>}]} {
    %c0 = arith.constant 0 : index
    %c0_0 = arith.constant 0 : index
    %0 = vector.load %arg1[%c0, %c0_0] : memref<256x160xbf16, #tpu.memory_space<vmem>>, vector<256x160xbf16>
    %c0_1 = arith.constant 0 : index
    %c0_2 = arith.constant 0 : index
    %1 = vector.load %arg2[%c0_1, %c0_2] : memref<160x128xbf16, #tpu.memory_space<vmem>>, vector<160x128xbf16>
    %cst = arith.constant dense<0.000000e+00> : vector<256x128xf32>
    %2 = tpu.matmul %0, %1, %cst {dimension_numbers = #tpu.dot_dimension_numbers<[1], [0], [0], [1], [0, 0, 1, 1], [], []>} : vector<256x160xbf16>, vector<160x128xbf16>, vector<256x128xf32> -> vector<256x128xf32>
    %3 = vector.shape_cast %2 : vector<256x128xf32> to vector<16x16x128xf32>
    %c0_3 = arith.constant 0 : index
    %c0_4 = arith.constant 0 : index
    %4 = vector.load %arg4[%c0_3, %c0_4] : memref<16x128xf32, #tpu.memory_space<vmem>>, vector<16x128xf32>
    %5 = vector.shape_cast %4 : vector<16x128xf32> to vector<1x16x128xf32>
    %6 = vector.broadcast %5 : vector<1x16x128xf32> to vector<16x16x128xf32>
    %7 = arith.addf %3, %6 : vector<16x16x128xf32>
    %cst_5 = arith.constant dense<0xFF800000> : vector<16x128xf32>
    %8 = vector.multi_reduction <maximumf>, %7, %cst_5 [1] : vector<16x16x128xf32> to vector<16x128xf32>
    %c0_6 = arith.constant 0 : index
    %c0_7 = arith.constant 0 : index
    %9 = vector.load %arg3[%c0_6, %c0_7] : memref<1x128xf32, #tpu.memory_space<vmem>>, vector<1x128xf32>
    %10 = vector.broadcast %9 : vector<1x128xf32> to vector<16x128xf32>
    %11 = arith.addf %8, %10 : vector<16x128xf32>
    %cst_8 = arith.constant 0.000000e+00 : f32
    %12 = vector.broadcast %cst_8 : f32 to vector<16x128xf32>
    %13 = arith.maximumf %11, %12 : vector<16x128xf32>
    %c0_9 = arith.constant 0 : index
    %c0_10 = arith.constant 0 : index
    %14 = vector.load %arg5[%c0_9, %c0_10] : memref<128x128xf32, #tpu.memory_space<vmem>>, vector<128x128xf32>
    %cst_11 = arith.constant dense<0.000000e+00> : vector<16x128xf32>
    %15 = tpu.matmul %13, %14, %cst_11 {dimension_numbers = #tpu.dot_dimension_numbers<[1], [0], [0], [1], [0, 0, 1, 1], [], []>} : vector<16x128xf32>, vector<128x128xf32>, vector<16x128xf32> -> vector<16x128xf32>
    %c0_12 = arith.constant 0 : index
    %c0_13 = arith.constant 0 : index
    %16 = vector.load %arg6[%c0_12, %c0_13] : memref<1x128xf32, #tpu.memory_space<vmem>>, vector<1x128xf32>
    %17 = vector.broadcast %16 : vector<1x128xf32> to vector<16x128xf32>
    %18 = arith.addf %15, %17 : vector<16x128xf32>
    %cst_14 = arith.constant dense<0xFF800000> : vector<16xf32>
    %19 = vector.multi_reduction <maximumf>, %18, %cst_14 [1] : vector<16x128xf32> to vector<16xf32>
    %20 = vector.shape_cast %19 : vector<16xf32> to vector<16x1xf32>
    %21 = vector.broadcast %20 : vector<16x1xf32> to vector<16x128xf32>
    %22 = arith.subf %18, %21 : vector<16x128xf32>
    %23 = math.exp %22 : vector<16x128xf32>
    %cst_15 = arith.constant dense<0.000000e+00> : vector<16xf32>
    %24 = vector.multi_reduction <add>, %23, %cst_15 [1] : vector<16x128xf32> to vector<16xf32>
    %25 = vector.shape_cast %24 : vector<16xf32> to vector<16x1xf32>
    %26 = tpu.reciprocal %25 {approx = true} : vector<16x1xf32> -> vector<16x1xf32>
    %27 = vector.broadcast %26 : vector<16x1xf32> to vector<16x128xf32>
    %28 = arith.mulf %23, %27 : vector<16x128xf32>
    %29 = arith.addf %13, %28 : vector<16x128xf32>
    %c0_16 = arith.constant 0 : index
    %c0_17 = arith.constant 0 : index
    %30 = vector.load %arg7[%c0_16, %c0_17] : memref<16x128xf32, #tpu.memory_space<vmem>>, vector<16x128xf32>
    tpu.vector_store %arg7[%c0_16, %c0_17], %29 {strides = array<i32>} : memref<16x128xf32, #tpu.memory_space<vmem>>, vector<16x128xf32>,
    return
  }
  func.func @transform_0(%arg0: i32) -> (i32, i32) {
    %c0_i32 = arith.constant 0 : i32
    %c0_i32_0 = arith.constant 0 : i32
    return %arg0, %c0_i32 : i32, i32
  }
  func.func @transform_1(%arg0: i32) -> (i32, i32) {
    %c0_i32 = arith.constant 0 : i32
    %c0_i32_0 = arith.constant 0 : i32
    %c0_i32_1 = arith.constant 0 : i32
    return %c0_i32, %c0_i32_0 : i32, i32
  }
  func.func @transform_2(%arg0: i32) -> (i32, i32) {
    %c0_i32 = arith.constant 0 : i32
    %c0_i32_0 = arith.constant 0 : i32
    %c0_i32_1 = arith.constant 0 : i32
    return %c0_i32, %c0_i32_0 : i32, i32
  }
  func.func @transform_3(%arg0: i32) -> (i32, i32) {
    %c0_i32 = arith.constant 0 : i32
    %c0_i32_0 = arith.constant 0 : i32
    %c0_i32_1 = arith.constant 0 : i32
    return %c0_i32, %c0_i32_0 : i32, i32
  }
  func.func @transform_4(%arg0: i32) -> (i32, i32) {
    %c0_i32 = arith.constant 0 : i32
    %c0_i32_0 = arith.constant 0 : i32
    %c0_i32_1 = arith.constant 0 : i32
    return %c0_i32, %c0_i32_0 : i32, i32
  }
  func.func @transform_5(%arg0: i32) -> (i32, i32) {
    %c0_i32 = arith.constant 0 : i32
    %c0_i32_0 = arith.constant 0 : i32
    %c0_i32_1 = arith.constant 0 : i32
    return %c0_i32, %c0_i32_0 : i32, i32
  }
  func.func @transform_6(%arg0: i32) -> (i32, i32) {
    %c0_i32 = arith.constant 0 : i32
    %c0_i32_0 = arith.constant 0 : i32
    return %arg0, %c0_i32 : i32, i32
  }
}

</mosaic_0001>

<llo_original>
// kernel: tpu_custom_call.1
$region0: #{tpu_custom_call.1}
  #allocation0 [shape = 'u32[]', space=smem, size = 0x4, offset = 0x4, fixed_abs, tag = 'smem constant byte address 0x4 - core index']
  #allocation1 [shape = 'u32[144,128]{1,0:T(1,128)}', space=vmem, size = 0x12000, scoped, tag = 'internal scratch']
  %s0 = inlined_call_operand.vmem [shape: bf16[256,160], index: 0, kind: input, shape index: {}]
  %s1 = inlined_call_operand.vmem [shape: bf16[160,128], index: 1, kind: input, shape index: {}]
  %s2 = inlined_call_operand.vmem [shape: f32[1,128], index: 2, kind: input, shape index: {}]
  %s3 = inlined_call_operand.vmem [shape: f32[16,128], index: 3, kind: input, shape index: {}]
  %s4 = inlined_call_operand.vmem [shape: f32[128,128], index: 4, kind: input, shape index: {}]
  %s5 = inlined_call_operand.vmem [shape: f32[1,128], index: 5, kind: input, shape index: {}]
  %s6 = inlined_call_operand.hbm [shape: f32[16,128], index: 6, kind: output, shape index: {}]
  %s7 = sld [smem:[#allocation0]]
  $region34: #{tpu_custom_call.1} parent=0
    _
  %s9 = ssub.s32 1, %s7
  %s10 = scalar_select 0, %s9, %s7
  $region1: #{tpu_custom_call.1} parent=0
    #allocation2 [shape = 'u8[8192]{0}', space=vmem, size = 0x2000, scoped, tag = 'output window, operand 0, single buffered']
    #allocation3 [shape = 's32[1]{0}', space=sflag, size = 0x4, scoped, tag = 'scoped memory for tpu_custom_call.1']
    %11 = vsyncpa [#allocation3], 0
    // Predicated region
    $region2: #{tpu_custom_call.1} parent=1 // pred_check
      _
    $region3: #{tpu_custom_call.1} parent=1 // pred_check_branch
      %13 = sbr.rel (0) target = $region5
    $region4: #{tpu_custom_call.1} parent=1 // pred_region
      _
    $region5: #{tpu_custom_call.1} parent=1 // pred_fallthru
      _
    // Predicated region
    $region6: #{tpu_custom_call.1} parent=1 // pred_check
      _
    $region7: #{tpu_custom_call.1} parent=1 // pred_check_branch
      %15 = sbr.rel (0) target = $region9
    $region8: #{tpu_custom_call.1} parent=1 // pred_region
      _
    $region9: #{tpu_custom_call.1} parent=1 // pred_fallthru
      _
    // Predicated region
    $region10: #{tpu_custom_call.1} parent=1 // pred_check
      _
    $region11: #{tpu_custom_call.1} parent=1 // pred_check_branch
      %17 = sbr.rel (0) target = $region13
    $region12: #{tpu_custom_call.1} parent=1 // pred_region
      _
    $region13: #{tpu_custom_call.1} parent=1 // pred_fallthru
      _
    // Predicated region
    $region14: #{tpu_custom_call.1} parent=1 // pred_check
      _
    $region15: #{tpu_custom_call.1} parent=1 // pred_check_branch
      %19 = sbr.rel (0) target = $region17
    $region16: #{tpu_custom_call.1} parent=1 // pred_region
      _
    $region17: #{tpu_custom_call.1} parent=1 // pred_fallthru
      _
    // Predicated region
    $region18: #{tpu_custom_call.1} parent=1 // pred_check
      _
    $region19: #{tpu_custom_call.1} parent=1 // pred_check_branch
      %21 = sbr.rel (0) target = $region21
    $region20: #{tpu_custom_call.1} parent=1 // pred_region
      _
    $region21: #{tpu_custom_call.1} parent=1 // pred_fallthru
      _
    // Predicated region
    $region22: #{tpu_custom_call.1} parent=1 // pred_check
      _
    $region23: #{tpu_custom_call.1} parent=1 // pred_check_branch
      %23 = sbr.rel (0) target = $region25
    $region24: #{tpu_custom_call.1} parent=1 // pred_region
      _
    $region25: #{tpu_custom_call.1} parent=1 // pred_fallthru
      _
    %v25 = vld [vmem:[%s0] sm:$0xff]
    %v26 = vld [vmem:[%s0 + $0x8] sm:$0xff]
    %v27 = vld [vmem:[%s0 + $0x10] sm:$0xff]
    %v28 = vld [vmem:[%s0 + $0x18] sm:$0xff]
    %v29 = vld [vmem:[%s0 + $0x20] sm:$0xff]
    %v30 = vld [vmem:[%s0 + $0x28] sm:$0xff]
    %v31 = vld [vmem:[%s0 + $0x30] sm:$0xff]
    %v32 = vld [vmem:[%s0 + $0x38] sm:$0xff]
    %v33 = vld [vmem:[%s0 + $0x40] sm:$0xff]
    %v34 = vld [vmem:[%s0 + $0x48] sm:$0xff]
    %v35 = vld [vmem:[%s0 + $0x50] sm:$0xff]
    %v36 = vld [vmem:[%s0 + $0x58] sm:$0xff]
    %v37 = vld [vmem:[%s0 + $0x60] sm:$0xff]
    %v38 = vld [vmem:[%s0 + $0x68] sm:$0xff]
    %v39 = vld [vmem:[%s0 + $0x70] sm:$0xff]
    %v40 = vld [vmem:[%s0 + $0x78] sm:$0xff]
    %v41 = vld [vmem:[%s0 + $0x80] sm:$0xff]
    %v42 = vld [vmem:[%s0 + $0x88] sm:$0xff]
    %v43 = vld [vmem:[%s0 + $0x90] sm:$0xff]
    %v44 = vld [vmem:[%s0 + $0x98] sm:$0xff]
    %v45 = vld [vmem:[%s0 + $0xa0] sm:$0xff]
    %v46 = vld [vmem:[%s0 + $0xa8] sm:$0xff]
    %v47 = vld [vmem:[%s0 + $0xb0] sm:$0xff]
    %v48 = vld [vmem:[%s0 + $0xb8] sm:$0xff]
    %v49 = vld [vmem:[%s0 + $0xc0] sm:$0xff]
    %v50 = vld [vmem:[%s0 + $0xc8] sm:$0xff]
    %v51 = vld [vmem:[%s0 + $0xd0] sm:$0xff]
    %v52 = vld [vmem:[%s0 + $0xd8] sm:$0xff]
    %v53 = vld [vmem:[%s0 + $0xe0] sm:$0xff]
    %v54 = vld [vmem:[%s0 + $0xe8] sm:$0xff]
    %v55 = vld [vmem:[%s0 + $0xf0] sm:$0xff]
    %v56 = vld [vmem:[%s0 + $0xf8] sm:$0xff]
    %v57 = vld [vmem:[%s1] sm:$0xf]
    %v58 = vld [vmem:[%s1 + $0x4] sm:$0xf]
    %v59 = vld [vmem:[%s1 + $0x8] sm:$0xf]
    %v60 = vld [vmem:[%s1 + $0xc] sm:$0xf]
    %v61 = vld [vmem:[%s1 + $0x10] sm:$0xf]
    %v62 = vld [vmem:[%s1 + $0x14] sm:$0xf]
    %v63 = vld [vmem:[%s1 + $0x18] sm:$0xf]
    %v64 = vld [vmem:[%s1 + $0x1c] sm:$0xf]
    %v65 = vld [vmem:[%s1 + $0x20] sm:$0xf]
    %v66 = vld [vmem:[%s1 + $0x24] sm:$0xf]
    %v67 = vld [vmem:[%s1 + $0x28] sm:$0xf]
    %v68 = vld [vmem:[%s1 + $0x2c] sm:$0xf]
    %v69 = vld [vmem:[%s1 + $0x30] sm:$0xf]
    %v70 = vld [vmem:[%s1 + $0x34] sm:$0xf]
    %v71 = vld [vmem:[%s1 + $0x38] sm:$0xf]
    %v72 = vld [vmem:[%s1 + $0x3c] sm:$0xf]
    %v73 = vld [vmem:[%s1 + $0x40] sm:$0xf]
    %v74 = vld [vmem:[%s1 + $0x44] sm:$0xf]
    %v75 = vld [vmem:[%s1 + $0x48] sm:$0xf]
    %v76 = vld [vmem:[%s1 + $0x4c] sm:$0xf]
    %v109 = vunpack.c.l.b16 %v25
    %v110 = vunpack.c.h.b16 %v25
    %v111 = vunpack.c.l.b16 %v26
    %v112 = vunpack.c.h.b16 %v26
    %v113 = vunpack.c.l.b16 %v27
    %v114 = vunpack.c.h.b16 %v27
    %v115 = vunpack.c.l.b16 %v28
    %v116 = vunpack.c.h.b16 %v28
    %v117 = vunpack.c.l.b16 %v29
    %v118 = vunpack.c.h.b16 %v29
    %v119 = vunpack.c.l.b16 %v30
    %v120 = vunpack.c.h.b16 %v30
    %v121 = vunpack.c.l.b16 %v31
    %v122 = vunpack.c.h.b16 %v31
    %v123 = vunpack.c.l.b16 %v32
    %v124 = vunpack.c.h.b16 %v32
    %v125 = vunpack.c.l.b16 %v33
    %v126 = vunpack.c.h.b16 %v33
    %v127 = vunpack.c.l.b16 %v34
    %v128 = vunpack.c.h.b16 %v34
    %v129 = vunpack.c.l.b16 %v35
    %v130 = vunpack.c.h.b16 %v35
    %v131 = vunpack.c.l.b16 %v36
    %v132 = vunpack.c.h.b16 %v36
    %v133 = vunpack.c.l.b16 %v37
    %v134 = vunpack.c.h.b16 %v37
    %v135 = vunpack.c.l.b16 %v38
    %v136 = vunpack.c.h.b16 %v38
    %v137 = vunpack.c.l.b16 %v39
    %v138 = vunpack.c.h.b16 %v39
    %v139 = vunpack.c.l.b16 %v40
    %v140 = vunpack.c.h.b16 %v40
    %v141 = vunpack.c.l.b16 %v41
    %v142 = vunpack.c.h.b16 %v41
    %v143 = vunpack.c.l.b16 %v42
    %v144 = vunpack.c.h.b16 %v42
    %v145 = vunpack.c.l.b16 %v43
    %v146 = vunpack.c.h.b16 %v43
    %v147 = vunpack.c.l.b16 %v44
    %v148 = vunpack.c.h.b16 %v44
    %v149 = vunpack.c.l.b16 %v45
    %v150 = vunpack.c.h.b16 %v45
    %v151 = vunpack.c.l.b16 %v46
    %v152 = vunpack.c.h.b16 %v46
    %v153 = vunpack.c.l.b16 %v47
    %v154 = vunpack.c.h.b16 %v47
    %v155 = vunpack.c.l.b16 %v48
    %v156 = vunpack.c.h.b16 %v48
    %v157 = vunpack.c.l.b16 %v49
    %v158 = vunpack.c.h.b16 %v49
    %v159 = vunpack.c.l.b16 %v50
    %v160 = vunpack.c.h.b16 %v50
    %v161 = vunpack.c.l.b16 %v51
    %v162 = vunpack.c.h.b16 %v51
    %v163 = vunpack.c.l.b16 %v52
    %v164 = vunpack.c.h.b16 %v52
    %v165 = vunpack.c.l.b16 %v53
    %v166 = vunpack.c.h.b16 %v53
    %v167 = vunpack.c.l.b16 %v54
    %v168 = vunpack.c.h.b16 %v54
    %v169 = vunpack.c.l.b16 %v55
    %v170 = vunpack.c.h.b16 %v55
    %v171 = vunpack.c.l.b16 %v56
    %v172 = vunpack.c.h.b16 %v56
    %v173 = vpack.c.b16 %v111, %v109
    %v174 = vpack.c.b16 %v112, %v110
    %v175 = vpack.c.b16 %v115, %v113
    %v176 = vpack.c.b16 %v116, %v114
    %v177 = vpack.c.b16 %v119, %v117
    %v178 = vpack.c.b16 %v120, %v118
    %v179 = vpack.c.b16 %v123, %v121
    %v180 = vpack.c.b16 %v124, %v122
    %v181 = vpack.c.b16 %v127, %v125
    %v182 = vpack.c.b16 %v128, %v126
    %v183 = vpack.c.b16 %v131, %v129
    %v184 = vpack.c.b16 %v132, %v130
    %v185 = vpack.c.b16 %v135, %v133
    %v186 = vpack.c.b16 %v136, %v134
    %v187 = vpack.c.b16 %v139, %v137
    %v188 = vpack.c.b16 %v140, %v138
    %v189 = vpack.c.b16 %v143, %v141
    %v190 = vpack.c.b16 %v144, %v142
    %v191 = vpack.c.b16 %v147, %v145
    %v192 = vpack.c.b16 %v148, %v146
    %v193 = vpack.c.b16 %v151, %v149
    %v194 = vpack.c.b16 %v152, %v150
    %v195 = vpack.c.b16 %v155, %v153
    %v196 = vpack.c.b16 %v156, %v154
    %v197 = vpack.c.b16 %v159, %v157
    %v198 = vpack.c.b16 %v160, %v158
    %v199 = vpack.c.b16 %v163, %v161
    %v200 = vpack.c.b16 %v164, %v162
    %v201 = vpack.c.b16 %v167, %v165
    %v202 = vpack.c.b16 %v168, %v166
    %v203 = vpack.c.b16 %v171, %v169
    %v204 = vpack.c.b16 %v172, %v170
    %v241 = vunpack.c.l.b16 %v57
    %v242 = vunpack.c.l.b16 %v58
    %v243 = vunpack.c.l.b16 %v59
    %v244 = vunpack.c.l.b16 %v60
    %v245 = vunpack.c.l.b16 %v61
    %v246 = vunpack.c.l.b16 %v62
    %v247 = vunpack.c.l.b16 %v63
    %v248 = vunpack.c.l.b16 %v64
    %v249 = vunpack.c.l.b16 %v65
    %v250 = vunpack.c.l.b16 %v66
    %v251 = vunpack.c.l.b16 %v67
    %v252 = vunpack.c.l.b16 %v68
    %v253 = vunpack.c.l.b16 %v69
    %v254 = vunpack.c.l.b16 %v70
    %v255 = vunpack.c.l.b16 %v71
    %v256 = vunpack.c.l.b16 %v72
    %v257 = vunpack.c.l.b16 %v73
    %v258 = vunpack.c.l.b16 %v74
    %v259 = vunpack.c.l.b16 %v75
    %v260 = vunpack.c.l.b16 %v76
    %v261 = vpack.c.b16 %v242, %v241
    %v262 = vpack.c.b16 %v244, %v243
    %v263 = vpack.c.b16 %v246, %v245
    %v264 = vpack.c.b16 %v248, %v247
    %v265 = vpack.c.b16 %v250, %v249
    %v266 = vpack.c.b16 %v252, %v251
    %v267 = vpack.c.b16 %v254, %v253
    %v268 = vpack.c.b16 %v256, %v255
    %v269 = vpack.c.b16 %v258, %v257
    %v270 = vpack.c.b16 %v260, %v259
    %vm281 = vcmask 261120
    %v283 = vsel %vm281, %v174, 0
    %v286 = vsel %vm281, %v176, 0
    %v289 = vsel %vm281, %v178, 0
    %v292 = vsel %vm281, %v180, 0
    %v295 = vsel %vm281, %v182, 0
    %v298 = vsel %vm281, %v184, 0
    %v301 = vsel %vm281, %v186, 0
    %v304 = vsel %vm281, %v188, 0
    %v307 = vsel %vm281, %v190, 0
    %v310 = vsel %vm281, %v192, 0
    %v313 = vsel %vm281, %v194, 0
    %v316 = vsel %vm281, %v196, 0
    %v319 = vsel %vm281, %v198, 0
    %v322 = vsel %vm281, %v200, 0
    %v325 = vsel %vm281, %v202, 0
    %v328 = vsel %vm281, %v204, 0
    %330 = vmatprep.subr.bf16.mxu0 0
    %331 = vmatpush1.bf16.msra.mxu0 %v268
    %332 = vmatprep.subr.bf16.mxu0 0
    %333 = vmatpush1.bf16.msra.mxu0 %v267
    %334 = vmatprep.subr.bf16.mxu0 0
    %335 = vmatpush1.bf16.msra.mxu0 %v266
    %336 = vmatprep.subr.bf16.mxu0 0
    %337 = vmatpush1.bf16.msra.mxu0 %v265
    %338 = vmatprep.subr.bf16.mxu0 0
    %339 = vmatpush1.bf16.msra.mxu0 %v264
    %340 = vmatprep.subr.bf16.mxu0 0
    %341 = vmatpush1.bf16.msra.mxu0 %v263
    %342 = vmatprep.subr.bf16.mxu0 0
    %343 = vmatpush1.bf16.msra.mxu0 %v262
    %344 = vmatprep.subr.bf16.mxu0 0
    %345 = vmatpush1.bf16.msra.mxu0 %v261
    %346 = vmatprep.subr.bf16.mxu0 0
    %347 = vmatpush2.bf16.msra.mxu0 0
    %348 = vmatprep.subr.bf16.mxu0 0
    %349 = vmatpush2.bf16.msra.mxu0 0
    %350 = vmatprep.subr.bf16.mxu0 0
    %351 = vmatpush2.bf16.msra.mxu0 0
    %352 = vmatprep.subr.bf16.mxu0 0
    %353 = vmatpush2.bf16.msra.mxu0 0
    %354 = vmatprep.subr.bf16.mxu0 0
    %355 = vmatpush2.bf16.msra.mxu0 0
    %356 = vmatprep.subr.bf16.mxu0 0
    %357 = vmatpush2.bf16.msra.mxu0 0
    %358 = vmatprep.subr.bf16.mxu0 0
    %359 = vmatpush2.bf16.msra.mxu0 %v270
    %360 = vmatprep.subr.bf16.mxu0 0
    %361 = vmatpush2.bf16.msra.mxu0 %v269
    %362 = vmatprep.mubr.bf16.mxu0 %v283
    %363 = vmatmul.mubr.bf16.gmra.mxu0 %v173
    %v364 = vpop.f32.mrf.mxu0
    %v365 = vadd.f32 0.0, %v364
    %v366 = vpop.f32.mrf.mxu0
    %v367 = vpop.f32.mrf.mxu0
    %v368 = vadd.f32 0.0, %v367
    %v369 = vpop.f32.mrf.mxu0
    %370 = vmatprep.mubr.bf16.mxu0 %v286
    %371 = vmatmul.mubr.bf16.gmra.mxu0 %v175
    %v372 = vpop.f32.mrf.mxu0
    %v373 = vadd.f32 0.0, %v372
    %v374 = vpop.f32.mrf.mxu0
    %v375 = vpop.f32.mrf.mxu0
    %v376 = vadd.f32 0.0, %v375
    %v377 = vpop.f32.mrf.mxu0
    %378 = vmatprep.mubr.bf16.mxu0 %v289
    %379 = vmatmul.mubr.bf16.gmra.mxu0 %v177
    %v380 = vpop.f32.mrf.mxu0
    %v381 = vadd.f32 0.0, %v380
    %v382 = vpop.f32.mrf.mxu0
    %v383 = vpop.f32.mrf.mxu0
    %v384 = vadd.f32 0.0, %v383
    %v385 = vpop.f32.mrf.mxu0
    %386 = vmatprep.mubr.bf16.mxu0 %v292
    %387 = vmatmul.mubr.bf16.gmra.mxu0 %v179
    %v388 = vpop.f32.mrf.mxu0
    %v389 = vadd.f32 0.0, %v388
    %v390 = vpop.f32.mrf.mxu0
    %v391 = vpop.f32.mrf.mxu0
    %v392 = vadd.f32 0.0, %v391
    %v393 = vpop.f32.mrf.mxu0
    %394 = vmatprep.mubr.bf16.mxu0 %v295
    %395 = vmatmul.mubr.bf16.gmra.mxu0 %v181
    %v396 = vpop.f32.mrf.mxu0
    %v397 = vadd.f32 0.0, %v396
    %v398 = vpop.f32.mrf.mxu0
    %v399 = vpop.f32.mrf.mxu0
    %v400 = vadd.f32 0.0, %v399
    %v401 = vpop.f32.mrf.mxu0
    %402 = vmatprep.mubr.bf16.mxu0 %v298
    %403 = vmatmul.mubr.bf16.gmra.mxu0 %v183
    %v404 = vpop.f32.mrf.mxu0
    %v405 = vadd.f32 0.0, %v404
    %v406 = vpop.f32.mrf.mxu0
    %v407 = vpop.f32.mrf.mxu0
    %v408 = vadd.f32 0.0, %v407
    %v409 = vpop.f32.mrf.mxu0
    %410 = vmatprep.mubr.bf16.mxu0 %v301
    %411 = vmatmul.mubr.bf16.gmra.mxu0 %v185
    %v412 = vpop.f32.mrf.mxu0
    %v413 = vadd.f32 0.0, %v412
    %v414 = vpop.f32.mrf.mxu0
    %v415 = vpop.f32.mrf.mxu0
    %v416 = vadd.f32 0.0, %v415
    %v417 = vpop.f32.mrf.mxu0
    %418 = vmatprep.mubr.bf16.mxu0 %v304
    %419 = vmatmul.mubr.bf16.gmra.mxu0 %v187
    %v420 = vpop.f32.mrf.mxu0
    %v421 = vadd.f32 0.0, %v420
    %v422 = vpop.f32.mrf.mxu0
    %v423 = vpop.f32.mrf.mxu0
    %v424 = vadd.f32 0.0, %v423
    %v425 = vpop.f32.mrf.mxu0
    %426 = vmatprep.mubr.bf16.mxu0 %v307
    %427 = vmatmul.mubr.bf16.gmra.mxu0 %v189
    %v428 = vpop.f32.mrf.mxu0
    %v429 = vadd.f32 0.0, %v428
    %v430 = vpop.f32.mrf.mxu0
    %v431 = vpop.f32.mrf.mxu0
    %v432 = vadd.f32 0.0, %v431
    %v433 = vpop.f32.mrf.mxu0
    %434 = vmatprep.mubr.bf16.mxu0 %v310
    %435 = vmatmul.mubr.bf16.gmra.mxu0 %v191
    %v436 = vpop.f32.mrf.mxu0
    %v437 = vadd.f32 0.0, %v436
    %v438 = vpop.f32.mrf.mxu0
    %v439 = vpop.f32.mrf.mxu0
    %v440 = vadd.f32 0.0, %v439
    %v441 = vpop.f32.mrf.mxu0
    %442 = vmatprep.mubr.bf16.mxu0 %v313
    %443 = vmatmul.mubr.bf16.gmra.mxu0 %v193
    %v444 = vpop.f32.mrf.mxu0
    %v445 = vadd.f32 0.0, %v444
    %v446 = vpop.f32.mrf.mxu0
    %v447 = vpop.f32.mrf.mxu0
    %v448 = vadd.f32 0.0, %v447
    %v449 = vpop.f32.mrf.mxu0
    %450 = vmatprep.mubr.bf16.mxu0 %v316
    %451 = vmatmul.mubr.bf16.gmra.mxu0 %v195
    %v452 = vpop.f32.mrf.mxu0
    %v453 = vadd.f32 0.0, %v452
    %v454 = vpop.f32.mrf.mxu0
    %v455 = vpop.f32.mrf.mxu0
    %v456 = vadd.f32 0.0, %v455
    %v457 = vpop.f32.mrf.mxu0
    %458 = vmatprep.mubr.bf16.mxu0 %v319
    %459 = vmatmul.mubr.bf16.gmra.mxu0 %v197
    %v460 = vpop.f32.mrf.mxu0
    %v461 = vadd.f32 0.0, %v460
    %v462 = vpop.f32.mrf.mxu0
    %v463 = vpop.f32.mrf.mxu0
    %v464 = vadd.f32 0.0, %v463
    %v465 = vpop.f32.mrf.mxu0
    %466 = vmatprep.mubr.bf16.mxu0 %v322
    %467 = vmatmul.mubr.bf16.gmra.mxu0 %v199
    %v468 = vpop.f32.mrf.mxu0
    %v469 = vadd.f32 0.0, %v468
    %v470 = vpop.f32.mrf.mxu0
    %v471 = vpop.f32.mrf.mxu0
    %v472 = vadd.f32 0.0, %v471
    %v473 = vpop.f32.mrf.mxu0
    %474 = vmatprep.mubr.bf16.mxu0 %v325
    %475 = vmatmul.mubr.bf16.gmra.mxu0 %v201
    %v476 = vpop.f32.mrf.mxu0
    %v477 = vadd.f32 0.0, %v476
    %v478 = vpop.f32.mrf.mxu0
    %v479 = vpop.f32.mrf.mxu0
    %v480 = vadd.f32 0.0, %v479
    %v481 = vpop.f32.mrf.mxu0
    %482 = vmatprep.mubr.bf16.mxu0 %v328
    %483 = vmatmul.mubr.bf16.gmra.mxu0 %v203
    %v484 = vpop.f32.mrf.mxu0
    %v485 = vadd.f32 0.0, %v484
    %v486 = vpop.f32.mrf.mxu0
    %v487 = vpop.f32.mrf.mxu0
    %v488 = vadd.f32 0.0, %v487
    %v489 = vpop.f32.mrf.mxu0
    %490 = vdwg.mxu0
    %v491 = vld [vmem:[%s3] sm:$0xff]
    %v492 = vld [vmem:[%s3 + $0x8] sm:$0xff]
    %v493 = vadd.f32 %v365, %v491
    %v494 = vadd.f32 %v368, %v492
    %v495 = vadd.f32 %v373, %v491
    %v496 = vadd.f32 %v376, %v492
    %v497 = vadd.f32 %v381, %v491
    %v498 = vadd.f32 %v384, %v492
    %v499 = vadd.f32 %v389, %v491
    %v500 = vadd.f32 %v392, %v492
    %v501 = vadd.f32 %v397, %v491
    %v502 = vadd.f32 %v400, %v492
    %v503 = vadd.f32 %v405, %v491
    %v504 = vadd.f32 %v408, %v492
    %v505 = vadd.f32 %v413, %v491
    %v506 = vadd.f32 %v416, %v492
    %v507 = vadd.f32 %v421, %v491
    %v508 = vadd.f32 %v424, %v492
    %v509 = vadd.f32 %v429, %v491
    %v510 = vadd.f32 %v432, %v492
    %v511 = vadd.f32 %v437, %v491
    %v512 = vadd.f32 %v440, %v492
    %v513 = vadd.f32 %v445, %v491
    %v514 = vadd.f32 %v448, %v492
    %v515 = vadd.f32 %v453, %v491
    %v516 = vadd.f32 %v456, %v492
    %v517 = vadd.f32 %v461, %v491
    %v518 = vadd.f32 %v464, %v492
    %v519 = vadd.f32 %v469, %v491
    %v520 = vadd.f32 %v472, %v492
    %v521 = vadd.f32 %v477, %v491
    %v522 = vadd.f32 %v480, %v492
    %v523 = vadd.f32 %v485, %v491
    %v524 = vadd.f32 %v488, %v492
    %v525 = vmax.f32 %v493, %v494
    %v526 = vrot.slane %v525, 4
    %v527 = vmax.f32 %v525, %v526
    %v528 = vrot.slane %v527, 2
    %v529 = vmax.f32 %v527, %v528
    %v530 = vrot.slane %v529, 1
    %v531 = vmax.f32 %v529, %v530
    %v532 = vmax.f32 %v495, %v496
    %v533 = vrot.slane %v532, 4
    %v534 = vmax.f32 %v532, %v533
    %v535 = vrot.slane %v534, 2
    %v536 = vmax.f32 %v534, %v535
    %v537 = vrot.slane %v536, 1
    %v538 = vmax.f32 %v536, %v537
    %v539 = vmax.f32 %v497, %v498
    %v540 = vrot.slane %v539, 4
    %v541 = vmax.f32 %v539, %v540
    %v542 = vrot.slane %v541, 2
    %v543 = vmax.f32 %v541, %v542
    %v544 = vrot.slane %v543, 1
    %v545 = vmax.f32 %v543, %v544
    %v546 = vmax.f32 %v499, %v500
    %v547 = vrot.slane %v546, 4
    %v548 = vmax.f32 %v546, %v547
    %v549 = vrot.slane %v548, 2
    %v550 = vmax.f32 %v548, %v549
    %v551 = vrot.slane %v550, 1
    %v552 = vmax.f32 %v550, %v551
    %v553 = vmax.f32 %v501, %v502
    %v554 = vrot.slane %v553, 4
    %v555 = vmax.f32 %v553, %v554
    %v556 = vrot.slane %v555, 2
    %v557 = vmax.f32 %v555, %v556
    %v558 = vrot.slane %v557, 1
    %v559 = vmax.f32 %v557, %v558
    %v560 = vmax.f32 %v503, %v504
    %v561 = vrot.slane %v560, 4
    %v562 = vmax.f32 %v560, %v561
    %v563 = vrot.slane %v562, 2
    %v564 = vmax.f32 %v562, %v563
    %v565 = vrot.slane %v564, 1
    %v566 = vmax.f32 %v564, %v565
    %v567 = vmax.f32 %v505, %v506
    %v568 = vrot.slane %v567, 4
    %v569 = vmax.f32 %v567, %v568
    %v570 = vrot.slane %v569, 2
    %v571 = vmax.f32 %v569, %v570
    %v572 = vrot.slane %v571, 1
    %v573 = vmax.f32 %v571, %v572
    %v574 = vmax.f32 %v507, %v508
    %v575 = vrot.slane %v574, 4
    %v576 = vmax.f32 %v574, %v575
    %v577 = vrot.slane %v576, 2
    %v578 = vmax.f32 %v576, %v577
    %v579 = vrot.slane %v578, 1
    %v580 = vmax.f32 %v578, %v579
    %v581 = vmax.f32 %v509, %v510
    %v582 = vrot.slane %v581, 4
    %v583 = vmax.f32 %v581, %v582
    %v584 = vrot.slane %v583, 2
    %v585 = vmax.f32 %v583, %v584
    %v586 = vrot.slane %v585, 1
    %v587 = vmax.f32 %v585, %v586
    %v588 = vmax.f32 %v511, %v512
    %v589 = vrot.slane %v588, 4
    %v590 = vmax.f32 %v588, %v589
    %v591 = vrot.slane %v590, 2
    %v592 = vmax.f32 %v590, %v591
    %v593 = vrot.slane %v592, 1
    %v594 = vmax.f32 %v592, %v593
    %v595 = vmax.f32 %v513, %v514
    %v596 = vrot.slane %v595, 4
    %v597 = vmax.f32 %v595, %v596
    %v598 = vrot.slane %v597, 2
    %v599 = vmax.f32 %v597, %v598
    %v600 = vrot.slane %v599, 1
    %v601 = vmax.f32 %v599, %v600
    %v602 = vmax.f32 %v515, %v516
    %v603 = vrot.slane %v602, 4
    %v604 = vmax.f32 %v602, %v603
    %v605 = vrot.slane %v604, 2
    %v606 = vmax.f32 %v604, %v605
    %v607 = vrot.slane %v606, 1
    %v608 = vmax.f32 %v606, %v607
    %v609 = vmax.f32 %v517, %v518
    %v610 = vrot.slane %v609, 4
    %v611 = vmax.f32 %v609, %v610
    %v612 = vrot.slane %v611, 2
    %v613 = vmax.f32 %v611, %v612
    %v614 = vrot.slane %v613, 1
    %v615 = vmax.f32 %v613, %v614
    %v616 = vmax.f32 %v519, %v520
    %v617 = vrot.slane %v616, 4
    %v618 = vmax.f32 %v616, %v617
    %v619 = vrot.slane %v618, 2
    %v620 = vmax.f32 %v618, %v619
    %v621 = vrot.slane %v620, 1
    %v622 = vmax.f32 %v620, %v621
    %v623 = vmax.f32 %v521, %v522
    %v624 = vrot.slane %v623, 4
    %v625 = vmax.f32 %v623, %v624
    %v626 = vrot.slane %v625, 2
    %v627 = vmax.f32 %v625, %v626
    %v628 = vrot.slane %v627, 1
    %v629 = vmax.f32 %v627, %v628
    %v630 = vmax.f32 %v523, %v524
    %v631 = vrot.slane %v630, 4
    %v632 = vmax.f32 %v630, %v631
    %v633 = vrot.slane %v632, 2
    %v634 = vmax.f32 %v632, %v633
    %v635 = vrot.slane %v634, 1
    %v636 = vmax.f32 %v634, %v635
    %v637 = vld [vmem:[%s2] sm:$0x1]
    %v639 = vlaneseq
    %v640 = vshrl.u32 %v639, 7
    %v641 = vsub.s32 0, %v640
    %v642 = vrot.slane %v637, %v641
    %v644 = vadd.f32 %v531, %v642
    %v645 = vadd.f32 %v538, %v642
    %v646 = vadd.f32 %v545, %v642
    %v647 = vadd.f32 %v552, %v642
    %v648 = vadd.f32 %v559, %v642
    %v649 = vadd.f32 %v566, %v642
    %v650 = vadd.f32 %v573, %v642
    %v651 = vadd.f32 %v580, %v642
    %v652 = vadd.f32 %v587, %v642
    %v653 = vadd.f32 %v594, %v642
    %v654 = vadd.f32 %v601, %v642
    %v655 = vadd.f32 %v608, %v642
    %v656 = vadd.f32 %v615, %v642
    %v657 = vadd.f32 %v622, %v642
    %v658 = vadd.f32 %v629, %v642
    %v659 = vadd.f32 %v636, %v642
    %v660 = vmax.f32 %v644, 0.0
    %v661 = vmax.f32 %v645, 0.0
    %v662 = vmax.f32 %v646, 0.0
    %v663 = vmax.f32 %v647, 0.0
    %v664 = vmax.f32 %v648, 0.0
    %v665 = vmax.f32 %v649, 0.0
    %v666 = vmax.f32 %v650, 0.0
    %v667 = vmax.f32 %v651, 0.0
    %v668 = vmax.f32 %v652, 0.0
    %v669 = vmax.f32 %v653, 0.0
    %v670 = vmax.f32 %v654, 0.0
    %v671 = vmax.f32 %v655, 0.0
    %v672 = vmax.f32 %v656, 0.0
    %v673 = vmax.f32 %v657, 0.0
    %v674 = vmax.f32 %v658, 0.0
    %v675 = vmax.f32 %v659, 0.0
    %v676 = vld [vmem:[%s4] sm:$0xff]
    %v677 = vld [vmem:[%s4 + $0x8] sm:$0xff]
    %v678 = vld [vmem:[%s4 + $0x10] sm:$0xff]
    %v679 = vld [vmem:[%s4 + $0x18] sm:$0xff]
    %v680 = vld [vmem:[%s4 + $0x20] sm:$0xff]
    %v681 = vld [vmem:[%s4 + $0x28] sm:$0xff]
    %v682 = vld [vmem:[%s4 + $0x30] sm:$0xff]
    %v683 = vld [vmem:[%s4 + $0x38] sm:$0xff]
    %v684 = vld [vmem:[%s4 + $0x40] sm:$0xff]
    %v685 = vld [vmem:[%s4 + $0x48] sm:$0xff]
    %v686 = vld [vmem:[%s4 + $0x50] sm:$0xff]
    %v687 = vld [vmem:[%s4 + $0x58] sm:$0xff]
    %v688 = vld [vmem:[%s4 + $0x60] sm:$0xff]
    %v689 = vld [vmem:[%s4 + $0x68] sm:$0xff]
    %v690 = vld [vmem:[%s4 + $0x70] sm:$0xff]
    %v691 = vld [vmem:[%s4 + $0x78] sm:$0xff]
    %v692 = vld [vmem:[%s5] sm:$0x1]
    %v694 = vlaneseq
    %v695 = vshrl.u32 %v694, 7
    %v696 = vsub.s32 0, %v695
    %v697 = vrot.slane %v692, %v696
    %v715 = vrot.slane %v661, 7
    %vm716 = vcmask 1041409
    %v717 = vsel %vm716, %v715, %v660
    %v718 = vrot.slane %v662, 6
    %vm719 = vcmask 1042434
    %v720 = vsel %vm719, %v718, %v717
    %v721 = vrot.slane %v663, 5
    %vm722 = vcmask 1043459
    %v723 = vsel %vm722, %v721, %v720
    %v724 = vrot.slane %v664, 4
    %vm725 = vcmask 1044484
    %v726 = vsel %vm725, %v724, %v723
    %v727 = vrot.slane %v665, 3
    %vm728 = vcmask 1045509
    %v729 = vsel %vm728, %v727, %v726
    %v730 = vrot.slane %v666, 2
    %vm731 = vcmask 1046534
    %v732 = vsel %vm731, %v730, %v729
    %v733 = vrot.slane %v667, 1
    %vm734 = vcmask 1047559
    %v735 = vsel %vm734, %v733, %v732
    %v736 = vrot.slane %v669, 7
    %v737 = vsel %vm716, %v736, %v668
    %v738 = vrot.slane %v670, 6
    %v739 = vsel %vm719, %v738, %v737
    %v740 = vrot.slane %v671, 5
    %v741 = vsel %vm722, %v740, %v739
    %v742 = vrot.slane %v672, 4
    %v743 = vsel %vm725, %v742, %v741
    %v744 = vrot.slane %v673, 3
    %v745 = vsel %vm728, %v744, %v743
    %v746 = vrot.slane %v674, 2
    %v747 = vsel %vm731, %v746, %v745
    %v748 = vrot.slane %v675, 1
    %v749 = vsel %vm734, %v748, %v747
    %752 = vmatprep.subr.mxu0 0.0
    %753 = vmatpush1.msra.mxu0 %v691
    %754 = vmatprep.subr.mxu0 0.0
    %755 = vmatpush1.msra.mxu0 %v690
    %756 = vmatprep.subr.mxu0 0.0
    %757 = vmatpush1.msra.mxu0 %v689
    %758 = vmatprep.subr.mxu0 0.0
    %759 = vmatpush1.msra.mxu0 %v688
    %760 = vmatprep.subr.mxu0 0.0
    %761 = vmatpush1.msra.mxu0 %v687
    %762 = vmatprep.subr.mxu0 0.0
    %763 = vmatpush1.msra.mxu0 %v686
    %764 = vmatprep.subr.mxu0 0.0
    %765 = vmatpush1.msra.mxu0 %v685
    %766 = vmatprep.subr.mxu0 0.0
    %767 = vmatpush1.msra.mxu0 %v684
    %768 = vmatprep.subr.mxu0 0.0
    %769 = vmatpush1.msra.mxu0 %v683
    %770 = vmatprep.subr.mxu0 0.0
    %771 = vmatpush1.msra.mxu0 %v682
    %772 = vmatprep.subr.mxu0 0.0
    %773 = vmatpush1.msra.mxu0 %v681
    %774 = vmatprep.subr.mxu0 0.0
    %775 = vmatpush1.msra.mxu0 %v680
    %776 = vmatprep.subr.mxu0 0.0
    %777 = vmatpush1.msra.mxu0 %v679
    %778 = vmatprep.subr.mxu0 0.0
    %779 = vmatpush1.msra.mxu0 %v678
    %780 = vmatprep.subr.mxu0 0.0
    %781 = vmatpush1.msra.mxu0 %v677
    %782 = vmatprep.subr.mxu0 0.0
    %783 = vmatpush1.msra.mxu0 %v676
    %784 = vmatprep.subr.mxu0 0.0
    %785 = vmatpush2.msra.mxu0 0.0
    %786 = vmatprep.subr.mxu0 0.0
    %787 = vmatpush2.msra.mxu0 0.0
    %788 = vmatprep.subr.mxu0 0.0
    %789 = vmatpush2.msra.mxu0 0.0
    %790 = vmatprep.subr.mxu0 0.0
    %791 = vmatpush2.msra.mxu0 0.0
    %792 = vmatprep.subr.mxu0 0.0
    %793 = vmatpush2.msra.mxu0 0.0
    %794 = vmatprep.subr.mxu0 0.0
    %795 = vmatpush2.msra.mxu0 0.0
    %796 = vmatprep.subr.mxu0 0.0
    %797 = vmatpush2.msra.mxu0 0.0
    %798 = vmatprep.subr.mxu0 0.0
    %799 = vmatpush2.msra.mxu0 0.0
    %800 = vmatprep.subr.mxu0 0.0
    %801 = vmatpush2.msra.mxu0 0.0
    %802 = vmatprep.subr.mxu0 0.0
    %803 = vmatpush2.msra.mxu0 0.0
    %804 = vmatprep.subr.mxu0 0.0
    %805 = vmatpush2.msra.mxu0 0.0
    %806 = vmatprep.subr.mxu0 0.0
    %807 = vmatpush2.msra.mxu0 0.0
    %808 = vmatprep.subr.mxu0 0.0
    %809 = vmatpush2.msra.mxu0 0.0
    %810 = vmatprep.subr.mxu0 0.0
    %811 = vmatpush2.msra.mxu0 0.0
    %812 = vmatprep.subr.mxu0 0.0
    %813 = vmatpush2.msra.mxu0 0.0
    %814 = vmatprep.subr.mxu0 0.0
    %815 = vmatpush2.msra.mxu0 0.0
    %816 = vmatprep.mubr.f32.mxu0 0.0
    %817 = vmatmul.mubr.f32.gmra.mxu0 %v735
    %v818 = vpop.f32.mrf.mxu0
    %v819 = vadd.f32 %v697, %v818
    %v820 = vpop.f32.mrf.mxu0
    %821 = vmatprep.mubr.f32.mxu0 0.0
    %822 = vmatmul.mubr.f32.gmra.mxu0 %v749
    %v823 = vpop.f32.mrf.mxu0
    %v824 = vadd.f32 %v697, %v823
    %v825 = vpop.f32.mrf.mxu0
    %826 = vdwg.mxu0
    %827 = vmax.xlane.f32.xlu0 %v819
    %v828 = vpop.xlane.xlu0 %827
    %829 = vmax.xlane.f32.xlu0 %v824
    %v830 = vpop.xlane.xlu0 %829
    %v831 = vsub.f32 %v819, %v828
    %v832 = vsub.f32 %v824, %v830
    %v833 = vmul.f32 %v831, 1.442695
    %v834 = vpow.pop %v833
    %v835 = vmul.f32 %v832, 1.442695
    %v836 = vpow.pop %v835
    %837 = vadd.xlane.f32.xlu0 %v834
    %v838 = vpop.xlane.xlu0 %837
    %839 = vadd.xlane.f32.xlu0 %v836
    %v840 = vpop.xlane.xlu0 %839
    %v841 = vrcp.pop %v838
    %v842 = vrcp.pop %v840
    %v843 = vmul.f32 %v834, %v841
    %v844 = vmul.f32 %v836, %v842
    %v847 = vrot.slane %v843, 1
    %v848 = vrot.slane %v843, 2
    %v849 = vrot.slane %v843, 3
    %v850 = vrot.slane %v843, 4
    %v851 = vrot.slane %v843, 5
    %v852 = vrot.slane %v843, 6
    %v853 = vrot.slane %v843, 7
    %v854 = vrot.slane %v844, 1
    %v855 = vrot.slane %v844, 2
    %v856 = vrot.slane %v844, 3
    %v857 = vrot.slane %v844, 4
    %v858 = vrot.slane %v844, 5
    %v859 = vrot.slane %v844, 6
    %v860 = vrot.slane %v844, 7
    %v877 = vadd.f32 %v660, %v843
    %v878 = vadd.f32 %v661, %v847
    %v879 = vadd.f32 %v662, %v848
    %v880 = vadd.f32 %v663, %v849
    %v881 = vadd.f32 %v664, %v850
    %v882 = vadd.f32 %v665, %v851
    %v883 = vadd.f32 %v666, %v852
    %v884 = vadd.f32 %v667, %v853
    %v885 = vadd.f32 %v668, %v844
    %v886 = vadd.f32 %v669, %v854
    %v887 = vadd.f32 %v670, %v855
    %v888 = vadd.f32 %v671, %v856
    %v889 = vadd.f32 %v672, %v857
    %v890 = vadd.f32 %v673, %v858
    %v891 = vadd.f32 %v674, %v859
    %v892 = vadd.f32 %v675, %v860
    %v909 = vrot.slane %v878, 7
    %v910 = vsel %vm716, %v909, %v877
    %v911 = vrot.slane %v879, 6
    %v912 = vsel %vm719, %v911, %v910
    %v913 = vrot.slane %v880, 5
    %v914 = vsel %vm722, %v913, %v912
    %v915 = vrot.slane %v881, 4
    %v916 = vsel %vm725, %v915, %v914
    %v917 = vrot.slane %v882, 3
    %v918 = vsel %vm728, %v917, %v916
    %v919 = vrot.slane %v883, 2
    %v920 = vsel %vm731, %v919, %v918
    %v921 = vrot.slane %v884, 1
    %v922 = vsel %vm734, %v921, %v920
    %v923 = vrot.slane %v886, 7
    %v924 = vsel %vm716, %v923, %v885
    %v925 = vrot.slane %v887, 6
    %v926 = vsel %vm719, %v925, %v924
    %v927 = vrot.slane %v888, 5
    %v928 = vsel %vm722, %v927, %v926
    %v929 = vrot.slane %v889, 4
    %v930 = vsel %vm725, %v929, %v928
    %v931 = vrot.slane %v890, 3
    %v932 = vsel %vm728, %v931, %v930
    %v933 = vrot.slane %v891, 2
    %v934 = vsel %vm731, %v933, %v932
    %v935 = vrot.slane %v892, 1
    %v936 = vsel %vm734, %v935, %v934
    %939 = vst [vmem:[#allocation2] sm:$0xff] %v922
    %940 = vst [vmem:[#allocation2 + $0x8] sm:$0xff] %v936
    // Predicated region
    $region26: #{tpu_custom_call.1} parent=1 // pred_check
      _
    $region27: #{tpu_custom_call.1} parent=1 // pred_check_branch
      %942 = sbr.rel (0) target = $region29
    $region28: #{tpu_custom_call.1} parent=1 // pred_region
      %s944 = ssub.s32 256, 256
      %945 = vsyncadd [#allocation3], %s944
      %s946 = sshll.u32 [#allocation2], 4
      %s947 = int_to_ptr.vmem [resolvable:$true] %s946
      %952 = dma.vmem_to_hbm [thread:$0]  %s947, 256, %s6, [#allocation3], 128, 128, 8
    $region29: #{tpu_custom_call.1} parent=1 // pred_fallthru
      _
    // Predicated region
    $region30: #{tpu_custom_call.1} parent=1 // pred_check
      _
    $region31: #{tpu_custom_call.1} parent=1 // pred_check_branch
      %954 = sbr.rel (0) target = $region33
    $region32: #{tpu_custom_call.1} parent=1 // pred_region
      %955 = dma.done [#allocation3], 256
    $region33: #{tpu_custom_call.1} parent=1 // pred_fallthru
      _
    %956 = vsyncpa [#allocation3], 1

</llo_original>
